<compile_context>
chip_gen: v7x
topology: tpu7x:2x2x1
jax: 0.10.0
libtpu: 0.0.40
codegen_flags: <defaults>
</compile_context>

<pallas_src>
import jax
import jax.numpy as jnp
from jax.experimental import pallas as pl
from jax.experimental.pallas import tpu as pltpu


def _round_up(a, b):
    return ((a + b - 1) // b) * b


def gcn_relu_kernel(a_ref, xw_ref, b_ref, o_ref):
    """One (row-tile i, contraction-tile k) step of relu(A_hat @ XW + b).

    The f32 output block doubles as the accumulator: its block index is
    constant along k, so it stays VMEM-resident across the whole reduction.
    """
    k = pl.program_id(1)
    tk = a_ref.shape[1]

    @pl.when(k == 0)
    def _():
        o_ref[...] = jnp.zeros_like(o_ref)

    if xw_ref.shape[0] == tk:
        # Streamed XW: this k-tile was DMA'd for us by the BlockSpec.
        xw = xw_ref[...]
    else:
        # VMEM-resident XW: slice the current contraction tile (aligned).
        start = pl.multiple_of(k * tk, 128)
        xw = xw_ref[pl.ds(start, tk), :]

    # (TM, TK) @ (TK, C_out_p), bf16 MXU inputs, f32 accumulation.
    o_ref[...] += jnp.dot(a_ref[...], xw, preferred_element_type=jnp.float32)

    @pl.when(k == pl.num_programs(1) - 1)
    def _():
        # Padded rows get relu(bias); the wrapper slices them off.
        o_ref[...] = jnp.maximum(o_ref[...] + b_ref[...], 0.0).astype(o_ref.dtype)


def build_normalized_adjacency(edge_index, num_nodes):
    """Dense A_hat = D^{-1/2}(A + I)D^{-1/2}, matching GCNConv's gcn_norm.

    Note: duplicate edges are summed (PyG's uncoalesced default behavior).
    """
    src = edge_index[0]
    dst = edge_index[1]
    loop = jnp.arange(num_nodes, dtype=src.dtype)
    src = jnp.concatenate([src, loop])
    dst = jnp.concatenate([dst, loop])
    ew = jnp.ones(src.shape[0], dtype=jnp.float32)
    deg = jnp.zeros((num_nodes,), jnp.float32).at[dst].add(ew)
    dis = jnp.where(deg > 0.0, jax.lax.rsqrt(deg), 0.0)
    norm = dis[src] * ew * dis[dst]
    a_hat = jnp.zeros((num_nodes, num_nodes), jnp.float32).at[dst, src].add(norm)
    return a_hat


def gnn_layer(x, edge_index, weight, bias):
    n, c_in = x.shape
    c_out = weight.shape[1]
    c_out_p = _round_up(c_out, 128)

    # ---- per-generation VMEM budget -----------------------------------------
    try:
        vmem_cap = int(pltpu.get_tpu_info().vmem_capacity_bytes)
    except Exception:
        vmem_cap = 64 * 1024 * 1024  # v7x-safe fallback
    vmem_budget = int(0.45 * vmem_cap)  # working-set budget for our buffers

    # ---- tile / padding policy ----------------------------------------------
    n_128 = _round_up(n, 128)
    n_p = n_128 if n_128 <= 512 else _round_up(n, 512)

    # Contraction tile tk: largest 128-multiple divisor of n_p, capped at 2048.
    tk = 128
    for cand in range(min(2048, n_p), 127, -128):
        if n_p % cand == 0:
            tk = cand
            break

    # Row tile tm: same size, but keep >= 2 row tiles when the graph is big
    # enough so both v7x TensorCores get "parallel" grid work.
    tm = tk
    if n_p // tm < 2 and n_p >= 512:
        tm = n_p // 2

    # Shrink the row tile if the double-buffered (A tile + f32 output tile)
    # working set would blow the budget (very wide c_out).
    while tm > 256 and (2 * tm * tk * 2 + 2 * tm * c_out_p * 4) > vmem_budget:
        tm //= 2

    # ---- glue (plain JAX): adjacency, projection, padding, bf16 -------------
    a_hat = build_normalized_adjacency(edge_index, n)
    a_hat = jnp.zeros((n_p, n_p), jnp.float32).at[:n, :n].set(a_hat)
    a_hat = a_hat.astype(jnp.bfloat16)

    # Projection at the TRUE c_in (f32 GEMM), single rounding to bf16.
    xw = jnp.dot(x, weight, precision=jax.lax.Precision.HIGHEST)
    xw_p = jnp.zeros((n_p, c_out_p), jnp.float32).at[:n, :c_out].set(xw)
    xw_p = xw_p.astype(jnp.bfloat16)

    b_p = jnp.zeros((1, c_out_p), jnp.float32).at[0, :c_out].set(bias)

    # ---- VMEM accounting / XW residency decision -----------------------------
    a_buf = 2 * tm * tk * 2            # bf16 A tiles, double-buffered
    out_buf = 2 * tm * c_out_p * 4     # f32 output/accumulator tiles
    bias_buf = 2 * 8 * c_out_p * 4     # (1, c_out_p) pads to 8 sublanes
    xw_full = n_p * c_out_p * 2        # bf16 resident XW (per buffer)
    xw_stream = 2 * tk * c_out_p * 2   # bf16 streamed XW tiles

    resident_xw = (a_buf + out_buf + bias_buf + 2 * xw_full) <= vmem_budget
    if resident_xw:
        # Constant index_map -> DMA'd into VMEM once, reused by every grid step.
        xw_spec = pl.BlockSpec((n_p, c_out_p), lambda i, k: (0, 0))
        need = a_buf + out_buf + bias_buf + 2 * xw_full
    else:
        xw_spec = pl.BlockSpec((tk, c_out_p), lambda i, k: (k, 0))
        need = a_buf + out_buf + bias_buf + xw_stream

    vmem_limit = min(int(0.80 * vmem_cap), max(32 * 1024 * 1024, 2 * need))

    grid = (n_p // tm, n_p // tk)

    out_p = pl.pallas_call(
        gcn_relu_kernel,
        out_shape=jax.ShapeDtypeStruct((n_p, c_out_p), jnp.float32),
        grid_spec=pltpu.PrefetchScalarGridSpec(
            num_scalar_prefetch=0,
            grid=grid,
            in_specs=[
                pl.BlockSpec((tm, tk), lambda i, k: (i, k)),       # A_hat tile
                xw_spec,                                            # XW (resident or streamed)
                pl.BlockSpec((1, c_out_p), lambda i, k: (0, 0)),    # bias (tiny, grid-invariant)
            ],
            out_specs=pl.BlockSpec((tm, c_out_p), lambda i, k: (i, 0)),
        ),
        compiler_params=pltpu.CompilerParams(
            dimension_semantics=("parallel", "arbitrary"),
            vmem_limit_bytes=vmem_limit,
        ),
    )(a_hat, xw_p, b_p)

    return out_p[:n, :c_out]


if __name__ == "__main__":
    key = jax.random.PRNGKey(0)
    N, E = 16, 24          # nodes, edges
    C_IN, C_OUT = 8, 32    # in_channels, out_channels

    k_x, k_e, k_w = jax.random.split(key, 3)
    x = jax.random.normal(k_x, (N, C_IN), dtype=jnp.float32)
    edge_index = jax.random.randint(k_e, (2, E), 0, N, dtype=jnp.int32)

    # GCNConv parameters: glorot-initialized weight [C_in, C_out], zero bias.
    limit = (6.0 / (C_IN + C_OUT)) ** 0.5
    weight = jax.random.uniform(k_w, (C_IN, C_OUT), jnp.float32, -limit, limit)
    bias = jnp.zeros((C_OUT,), jnp.float32)

    out = gnn_layer(x, edge_index, weight, bias)
    out = jax.block_until_ready(out)

    # Pure-f32 JAX reference (kernel streams bf16 -> loosened tolerance).
    a_hat = build_normalized_adjacency(edge_index, N)
    ref = jnp.maximum(a_hat @ (x @ weight) + bias[None, :], 0.0)
    assert out.shape == (N, C_OUT)
    assert jnp.allclose(out, ref, atol=2e-2, rtol=2e-2), float(
        jnp.max(jnp.abs(out - ref))
    )

    print("KERNEL_OK")
</pallas_src>

<mosaic_0001>
module attributes {stable_mosaic.version = 11 : i64} {
  func.func @gcn_relu_kernel(%arg0: i32, %arg1: i32, %arg2: memref<128x128xbf16, #tpu.memory_space<vmem>>, %arg3: memref<128x128xbf16, #tpu.memory_space<vmem>>, %arg4: memref<1x128xf32, #tpu.memory_space<vmem>>, %arg5: memref<128x128xf32, #tpu.memory_space<vmem>>) attributes {dimension_semantics = [#tpu.dimension_semantics<parallel>, #tpu.dimension_semantics<arbitrary>], iteration_bounds = array<i64: 1, 1>, scalar_prefetch = 0 : i64, scratch_operands = 0 : i64, tpu.core_type = #tpu.core_type<tc>, window_params = [{transform_indices = @transform_0, window_bounds = array<i64: 128, 128>}, {pipeline_mode = #tpu.pipeline_mode<synchronous>, transform_indices = @transform_1, window_bounds = array<i64: 128, 128>}, {pipeline_mode = #tpu.pipeline_mode<synchronous>, transform_indices = @transform_2, window_bounds = array<i64: 1, 128>}, {transform_indices = @transform_3, window_bounds = array<i64: 128, 128>}]} {
    %c0_i32 = arith.constant 0 : i32
    %0 = arith.cmpi eq, %arg1, %c0_i32 : i32
    %1 = arith.extui %0 : i1 to i32
    %c0_i32_0 = arith.constant 0 : i32
    %2 = arith.cmpi ne, %1, %c0_i32_0 : i32
    scf.if %2 {
      %cst_10 = arith.constant 0.000000e+00 : f32
      %12 = vector.broadcast %cst_10 : f32 to vector<128x128xf32>
      %c0_11 = arith.constant 0 : index
      %c0_12 = arith.constant 0 : index
      %13 = vector.load %arg5[%c0_11, %c0_12] : memref<128x128xf32, #tpu.memory_space<vmem>>, vector<128x128xf32>
      tpu.vector_store %arg5[%c0_11, %c0_12], %12 {strides = array<i32>} : memref<128x128xf32, #tpu.memory_space<vmem>>, vector<128x128xf32>,
    } else {
    }
    %c0 = arith.constant 0 : index
    %c0_1 = arith.constant 0 : index
    %3 = vector.load %arg3[%c0, %c0_1] : memref<128x128xbf16, #tpu.memory_space<vmem>>, vector<128x128xbf16>
    %c0_2 = arith.constant 0 : index
    %c0_3 = arith.constant 0 : index
    %4 = vector.load %arg5[%c0_2, %c0_3] : memref<128x128xf32, #tpu.memory_space<vmem>>, vector<128x128xf32>
    %c0_4 = arith.constant 0 : index
    %c0_5 = arith.constant 0 : index
    %5 = vector.load %arg2[%c0_4, %c0_5] : memref<128x128xbf16, #tpu.memory_space<vmem>>, vector<128x128xbf16>
    %cst = arith.constant dense<0.000000e+00> : vector<128x128xf32>
    %6 = tpu.matmul %5, %3, %cst {dimension_numbers = #tpu.dot_dimension_numbers<[1], [0], [0], [1], [0, 0, 1, 1], [], []>} : vector<128x128xbf16>, vector<128x128xbf16>, vector<128x128xf32> -> vector<128x128xf32>
    %7 = arith.addf %4, %6 : vector<128x128xf32>
    %c0_6 = arith.constant 0 : index
    %c0_7 = arith.constant 0 : index
    %8 = vector.load %arg5[%c0_6, %c0_7] : memref<128x128xf32, #tpu.memory_space<vmem>>, vector<128x128xf32>
    tpu.vector_store %arg5[%c0_6, %c0_7], %7 {strides = array<i32>} : memref<128x128xf32, #tpu.memory_space<vmem>>, vector<128x128xf32>,
    %c0_i32_8 = arith.constant 0 : i32
    %9 = arith.cmpi eq, %arg1, %c0_i32_8 : i32
    %10 = arith.extui %9 : i1 to i32
    %c0_i32_9 = arith.constant 0 : i32
    %11 = arith.cmpi ne, %10, %c0_i32_9 : i32
    scf.if %11 {
      %c0_10 = arith.constant 0 : index
      %c0_11 = arith.constant 0 : index
      %12 = vector.load %arg5[%c0_10, %c0_11] : memref<128x128xf32, #tpu.memory_space<vmem>>, vector<128x128xf32>
      %c0_12 = arith.constant 0 : index
      %c0_13 = arith.constant 0 : index
      %13 = vector.load %arg4[%c0_12, %c0_13] : memref<1x128xf32, #tpu.memory_space<vmem>>, vector<1x128xf32>
      %14 = vector.broadcast %13 : vector<1x128xf32> to vector<128x128xf32>
      %15 = arith.addf %12, %14 : vector<128x128xf32>
      %cst_14 = arith.constant 0.000000e+00 : f32
      %16 = vector.broadcast %cst_14 : f32 to vector<128x128xf32>
      %17 = arith.maximumf %15, %16 : vector<128x128xf32>
      %c0_15 = arith.constant 0 : index
      %c0_16 = arith.constant 0 : index
      %18 = vector.load %arg5[%c0_15, %c0_16] : memref<128x128xf32, #tpu.memory_space<vmem>>, vector<128x128xf32>
      tpu.vector_store %arg5[%c0_15, %c0_16], %17 {strides = array<i32>} : memref<128x128xf32, #tpu.memory_space<vmem>>, vector<128x128xf32>,
    } else {
    }
    return
  }
  func.func @transform_0(%arg0: i32, %arg1: i32) -> (i32, i32) {
    %c0_i32 = arith.constant 0 : i32
    return %arg0, %arg1 : i32, i32
  }
  func.func @transform_1(%arg0: i32, %arg1: i32) -> (i32, i32) {
    %c0_i32 = arith.constant 0 : i32
    %c0_i32_0 = arith.constant 0 : i32
    %c0_i32_1 = arith.constant 0 : i32
    return %c0_i32, %c0_i32_0 : i32, i32
  }
  func.func @transform_2(%arg0: i32, %arg1: i32) -> (i32, i32) {
    %c0_i32 = arith.constant 0 : i32
    %c0_i32_0 = arith.constant 0 : i32
    %c0_i32_1 = arith.constant 0 : i32
    return %c0_i32, %c0_i32_0 : i32, i32
  }
  func.func @transform_3(%arg0: i32, %arg1: i32) -> (i32, i32) {
    %c0_i32 = arith.constant 0 : i32
    %c0_i32_0 = arith.constant 0 : i32
    return %arg0, %c0_i32 : i32, i32
  }
}

</mosaic_0001>

<llo_original>
// kernel: tpu_custom_call.1
$region0: #{tpu_custom_call.1}
  #allocation0 [shape = 'u32[]', space=smem, size = 0x4, offset = 0x4, fixed_abs, tag = 'smem constant byte address 0x4 - core index']
  #allocation1 [shape = 'u32[144,128]{1,0:T(1,128)}', space=vmem, size = 0x12000, scoped, tag = 'internal scratch']
  %s0 = inlined_call_operand.hbm [shape: bf16[128,128], index: 0, kind: input, shape index: {}]
  %s1 = inlined_call_operand.hbm [shape: bf16[128,128], index: 1, kind: input, shape index: {}]
  %s2 = inlined_call_operand.vmem [shape: f32[1,128], index: 2, kind: input, shape index: {}]
  %s3 = inlined_call_operand.hbm [shape: f32[128,128], index: 3, kind: output, shape index: {}]
  %s4 = sld [smem:[#allocation0]]
  $region38: #{tpu_custom_call.1} parent=0
    _
  %s6 = ssub.s32 1, %s4
  %s7 = scalar_select 0, %s6, %s4
  $region1: #{tpu_custom_call.1} parent=0
    #allocation2 [shape = 'u8[32768]{0}', space=vmem, size = 0x8000, scoped, tag = 'input window, operand 0, single buffered']
    #allocation3 [shape = 's32[1]{0}', space=sflag, size = 0x4, scoped, tag = 'scoped memory for tpu_custom_call.1']
    #allocation4 [shape = 's32[1]{0}', space=sflag, size = 0x4, scoped, tag = 'scoped memory for tpu_custom_call.1']
    #allocation5 [shape = 'u8[32768]{0}', space=vmem, size = 0x8000, scoped, tag = 'input window, operand 1, single buffered']
    #allocation6 [shape = 's32[1]{0}', space=sflag, size = 0x4, scoped, tag = 'scoped memory for tpu_custom_call.1']
    #allocation7 [shape = 'u8[65536]{0}', space=vmem, size = 0x10000, scoped, tag = 'output window, operand 0, single buffered']
    %8 = vsyncpa [#allocation3], 0
    %9 = vsyncpa [#allocation6], 0
    %10 = vsyncpa [#allocation4], 0
    // Predicated region
    $region2: #{tpu_custom_call.1} parent=1 // pred_check
      _
    $region3: #{tpu_custom_call.1} parent=1 // pred_check_branch
      %12 = sbr.rel (0) target = $region5
    $region4: #{tpu_custom_call.1} parent=1 // pred_region
      %s14 = ssub.s32 1024, 1024
      %15 = vsyncadd [#allocation3], %s14
      %s16 = sshll.u32 [#allocation2], 4
      %s17 = int_to_ptr.vmem [resolvable:$true] %s16
      %22 = dma.hbm_to_vmem [thread:$0]  %s0, 1024, %s17, [#allocation3], 64, 64, 4
    $region5: #{tpu_custom_call.1} parent=1 // pred_fallthru
      _
    // Predicated region
    $region6: #{tpu_custom_call.1} parent=1 // pred_check
      _
    $region7: #{tpu_custom_call.1} parent=1 // pred_check_branch
      %24 = sbr.rel (0) target = $region9
    $region8: #{tpu_custom_call.1} parent=1 // pred_region
      %s26 = ssub.s32 1024, 1024
      %27 = vsyncadd [#allocation6], %s26
      %s28 = sshll.u32 [#allocation5], 4
      %s29 = int_to_ptr.vmem [resolvable:$true] %s28
      %34 = dma.hbm_to_vmem [thread:$0]  %s1, 1024, %s29, [#allocation6], 64, 64, 4
    $region9: #{tpu_custom_call.1} parent=1 // pred_fallthru
      _
    // Predicated region
    $region10: #{tpu_custom_call.1} parent=1 // pred_check
      _
    $region11: #{tpu_custom_call.1} parent=1 // pred_check_branch
      %36 = sbr.rel (0) target = $region13
    $region12: #{tpu_custom_call.1} parent=1 // pred_region
      _
    $region13: #{tpu_custom_call.1} parent=1 // pred_fallthru
      _
    // Predicated region
    $region14: #{tpu_custom_call.1} parent=1 // pred_check
      _
    $region15: #{tpu_custom_call.1} parent=1 // pred_check_branch
      %38 = sbr.rel (0) target = $region17
    $region16: #{tpu_custom_call.1} parent=1 // pred_region
      %39 = dma.done [#allocation3], 1024
    $region17: #{tpu_custom_call.1} parent=1 // pred_fallthru
      _
    // Predicated region
    $region18: #{tpu_custom_call.1} parent=1 // pred_check
      _
    $region19: #{tpu_custom_call.1} parent=1 // pred_check_branch
      %41 = sbr.rel (0) target = $region21
    $region20: #{tpu_custom_call.1} parent=1 // pred_region
      %42 = dma.done [#allocation6], 1024
    $region21: #{tpu_custom_call.1} parent=1 // pred_fallthru
      _
    %p44 = scmp.eq.s32.totalorder 0, 0
    // Predicated region
    $region22: #{tpu_custom_call.1} parent=1 // pred_check
      %p45 = pneg %p44
    $region23: #{tpu_custom_call.1} parent=1 // pred_check_branch
      %47 = sbr.rel (%p45) target = $region25
    $region24: #{tpu_custom_call.1} parent=1 // pred_region
      %48 = vst [vmem:[#allocation7] sm:$0xff] 0.0
      %49 = vst [vmem:[#allocation7 + $0x8] sm:$0xff] 0.0
      %50 = vst [vmem:[#allocation7 + $0x10] sm:$0xff] 0.0
      %51 = vst [vmem:[#allocation7 + $0x18] sm:$0xff] 0.0
      %52 = vst [vmem:[#allocation7 + $0x20] sm:$0xff] 0.0
      %53 = vst [vmem:[#allocation7 + $0x28] sm:$0xff] 0.0
      %54 = vst [vmem:[#allocation7 + $0x30] sm:$0xff] 0.0
      %55 = vst [vmem:[#allocation7 + $0x38] sm:$0xff] 0.0
      %56 = vst [vmem:[#allocation7 + $0x40] sm:$0xff] 0.0
      %57 = vst [vmem:[#allocation7 + $0x48] sm:$0xff] 0.0
      %58 = vst [vmem:[#allocation7 + $0x50] sm:$0xff] 0.0
      %59 = vst [vmem:[#allocation7 + $0x58] sm:$0xff] 0.0
      %60 = vst [vmem:[#allocation7 + $0x60] sm:$0xff] 0.0
      %61 = vst [vmem:[#allocation7 + $0x68] sm:$0xff] 0.0
      %62 = vst [vmem:[#allocation7 + $0x70] sm:$0xff] 0.0
      %63 = vst [vmem:[#allocation7 + $0x78] sm:$0xff] 0.0
    $region25: #{tpu_custom_call.1} parent=1 // pred_fallthru
      _
    %v64 = vld [vmem:[#allocation5] sm:$0xf]
    %v65 = vld [vmem:[#allocation5 + $0x4] sm:$0xf]
    %v66 = vld [vmem:[#allocation5 + $0x8] sm:$0xf]
    %v67 = vld [vmem:[#allocation5 + $0xc] sm:$0xf]
    %v68 = vld [vmem:[#allocation5 + $0x10] sm:$0xf]
    %v69 = vld [vmem:[#allocation5 + $0x14] sm:$0xf]
    %v70 = vld [vmem:[#allocation5 + $0x18] sm:$0xf]
    %v71 = vld [vmem:[#allocation5 + $0x1c] sm:$0xf]
    %v72 = vld [vmem:[#allocation5 + $0x20] sm:$0xf]
    %v73 = vld [vmem:[#allocation5 + $0x24] sm:$0xf]
    %v74 = vld [vmem:[#allocation5 + $0x28] sm:$0xf]
    %v75 = vld [vmem:[#allocation5 + $0x2c] sm:$0xf]
    %v76 = vld [vmem:[#allocation5 + $0x30] sm:$0xf]
    %v77 = vld [vmem:[#allocation5 + $0x34] sm:$0xf]
    %v78 = vld [vmem:[#allocation5 + $0x38] sm:$0xf]
    %v79 = vld [vmem:[#allocation5 + $0x3c] sm:$0xf]
    %v80 = vld [vmem:[#allocation7] sm:$0xff]
    %v81 = vld [vmem:[#allocation7 + $0x8] sm:$0xff]
    %v82 = vld [vmem:[#allocation7 + $0x10] sm:$0xff]
    %v83 = vld [vmem:[#allocation7 + $0x18] sm:$0xff]
    %v84 = vld [vmem:[#allocation7 + $0x20] sm:$0xff]
    %v85 = vld [vmem:[#allocation7 + $0x28] sm:$0xff]
    %v86 = vld [vmem:[#allocation7 + $0x30] sm:$0xff]
    %v87 = vld [vmem:[#allocation7 + $0x38] sm:$0xff]
    %v88 = vld [vmem:[#allocation7 + $0x40] sm:$0xff]
    %v89 = vld [vmem:[#allocation7 + $0x48] sm:$0xff]
    %v90 = vld [vmem:[#allocation7 + $0x50] sm:$0xff]
    %v91 = vld [vmem:[#allocation7 + $0x58] sm:$0xff]
    %v92 = vld [vmem:[#allocation7 + $0x60] sm:$0xff]
    %v93 = vld [vmem:[#allocation7 + $0x68] sm:$0xff]
    %v94 = vld [vmem:[#allocation7 + $0x70] sm:$0xff]
    %v95 = vld [vmem:[#allocation7 + $0x78] sm:$0xff]
    %v96 = vld [vmem:[#allocation2] sm:$0xf]
    %v97 = vld [vmem:[#allocation2 + $0x4] sm:$0xf]
    %v98 = vld [vmem:[#allocation2 + $0x8] sm:$0xf]
    %v99 = vld [vmem:[#allocation2 + $0xc] sm:$0xf]
    %v100 = vld [vmem:[#allocation2 + $0x10] sm:$0xf]
    %v101 = vld [vmem:[#allocation2 + $0x14] sm:$0xf]
    %v102 = vld [vmem:[#allocation2 + $0x18] sm:$0xf]
    %v103 = vld [vmem:[#allocation2 + $0x1c] sm:$0xf]
    %v104 = vld [vmem:[#allocation2 + $0x20] sm:$0xf]
    %v105 = vld [vmem:[#allocation2 + $0x24] sm:$0xf]
    %v106 = vld [vmem:[#allocation2 + $0x28] sm:$0xf]
    %v107 = vld [vmem:[#allocation2 + $0x2c] sm:$0xf]
    %v108 = vld [vmem:[#allocation2 + $0x30] sm:$0xf]
    %v109 = vld [vmem:[#allocation2 + $0x34] sm:$0xf]
    %v110 = vld [vmem:[#allocation2 + $0x38] sm:$0xf]
    %v111 = vld [vmem:[#allocation2 + $0x3c] sm:$0xf]
    %v128 = vunpack.c.l.b16 %v96
    %v129 = vunpack.c.l.b16 %v97
    %v130 = vunpack.c.l.b16 %v98
    %v131 = vunpack.c.l.b16 %v99
    %v132 = vunpack.c.l.b16 %v100
    %v133 = vunpack.c.l.b16 %v101
    %v134 = vunpack.c.l.b16 %v102
    %v135 = vunpack.c.l.b16 %v103
    %v136 = vunpack.c.l.b16 %v104
    %v137 = vunpack.c.l.b16 %v105
    %v138 = vunpack.c.l.b16 %v106
    %v139 = vunpack.c.l.b16 %v107
    %v140 = vunpack.c.l.b16 %v108
    %v141 = vunpack.c.l.b16 %v109
    %v142 = vunpack.c.l.b16 %v110
    %v143 = vunpack.c.l.b16 %v111
    %v144 = vpack.c.b16 %v129, %v128
    %v145 = vpack.c.b16 %v131, %v130
    %v146 = vpack.c.b16 %v133, %v132
    %v147 = vpack.c.b16 %v135, %v134
    %v148 = vpack.c.b16 %v137, %v136
    %v149 = vpack.c.b16 %v139, %v138
    %v150 = vpack.c.b16 %v141, %v140
    %v151 = vpack.c.b16 %v143, %v142
    %v176 = vunpack.c.l.b16 %v64
    %v177 = vunpack.c.l.b16 %v65
    %v178 = vunpack.c.l.b16 %v66
    %v179 = vunpack.c.l.b16 %v67
    %v180 = vunpack.c.l.b16 %v68
    %v181 = vunpack.c.l.b16 %v69
    %v182 = vunpack.c.l.b16 %v70
    %v183 = vunpack.c.l.b16 %v71
    %v184 = vunpack.c.l.b16 %v72
    %v185 = vunpack.c.l.b16 %v73
    %v186 = vunpack.c.l.b16 %v74
    %v187 = vunpack.c.l.b16 %v75
    %v188 = vunpack.c.l.b16 %v76
    %v189 = vunpack.c.l.b16 %v77
    %v190 = vunpack.c.l.b16 %v78
    %v191 = vunpack.c.l.b16 %v79
    %v192 = vpack.c.b16 %v177, %v176
    %v193 = vpack.c.b16 %v179, %v178
    %v194 = vpack.c.b16 %v181, %v180
    %v195 = vpack.c.b16 %v183, %v182
    %v196 = vpack.c.b16 %v185, %v184
    %v197 = vpack.c.b16 %v187, %v186
    %v198 = vpack.c.b16 %v189, %v188
    %v199 = vpack.c.b16 %v191, %v190
    %208 = vmatprep.subr.bf16.mxu0 0
    %209 = vmatpush1.bf16.msra.mxu0 %v192
    %210 = vmatprep.subr.bf16.mxu0 0
    %211 = vmatpush1.bf16.msra.mxu0 %v193
    %212 = vmatprep.subr.bf16.mxu0 0
    %213 = vmatpush1.bf16.msra.mxu0 %v194
    %214 = vmatprep.subr.bf16.mxu0 0
    %215 = vmatpush1.bf16.msra.mxu0 %v195
    %216 = vmatprep.subr.bf16.mxu0 0
    %217 = vmatpush1.bf16.msra.mxu0 %v196
    %218 = vmatprep.subr.bf16.mxu0 0
    %219 = vmatpush1.bf16.msra.mxu0 %v197
    %220 = vmatprep.subr.bf16.mxu0 0
    %221 = vmatpush1.bf16.msra.mxu0 %v198
    %222 = vmatprep.subr.bf16.mxu0 0
    %223 = vmatpush1.bf16.msra.mxu0 %v199
    %224 = vmatprep.subr.bf16.mxu0 0
    %225 = vmatpush1.bf16.msra.mxu0 0
    %226 = vmatprep.subr.bf16.mxu0 0
    %227 = vmatpush1.bf16.msra.mxu0 0
    %228 = vmatprep.subr.bf16.mxu0 0
    %229 = vmatpush1.bf16.msra.mxu0 0
    %230 = vmatprep.subr.bf16.mxu0 0
    %231 = vmatpush1.bf16.msra.mxu0 0
    %232 = vmatprep.subr.bf16.mxu0 0
    %233 = vmatpush1.bf16.msra.mxu0 0
    %234 = vmatprep.subr.bf16.mxu0 0
    %235 = vmatpush1.bf16.msra.mxu0 0
    %236 = vmatprep.subr.bf16.mxu0 0
    %237 = vmatpush1.bf16.msra.mxu0 0
    %238 = vmatprep.subr.bf16.mxu0 0
    %239 = vmatpush1.bf16.msra.mxu0 0
    %240 = vmatprep.mubr.bf16.mxu0 0
    %241 = vmatmul.mubr.bf16.gmra.mrb[0].mxu0 %v144
    %v242 = vpop.f32.mrb[0].mxu0
    %v243 = vadd.f32 0.0, %v242
    %v244 = vpop.f32.mrb[0].mxu0
    %v245 = vpop.f32.mrb[0].mxu0
    %v246 = vadd.f32 0.0, %v245
    %v247 = vpop.f32.mrb[0].mxu0
    %248 = vmatprep.mubr.bf16.mxu0 0
    %249 = vmatmul.mubr.bf16.gmra.mrb[0].mxu0 %v145
    %v250 = vpop.f32.mrb[0].mxu0
    %v251 = vadd.f32 0.0, %v250
    %v252 = vpop.f32.mrb[0].mxu0
    %v253 = vpop.f32.mrb[0].mxu0
    %v254 = vadd.f32 0.0, %v253
    %v255 = vpop.f32.mrb[0].mxu0
    %256 = vmatprep.mubr.bf16.mxu0 0
    %257 = vmatmul.mubr.bf16.gmra.mrb[0].mxu0 %v146
    %v258 = vpop.f32.mrb[0].mxu0
    %v259 = vadd.f32 0.0, %v258
    %v260 = vpop.f32.mrb[0].mxu0
    %v261 = vpop.f32.mrb[0].mxu0
    %v262 = vadd.f32 0.0, %v261
    %v263 = vpop.f32.mrb[0].mxu0
    %264 = vmatprep.mubr.bf16.mxu0 0
    %265 = vmatmul.mubr.bf16.gmra.mrb[0].mxu0 %v147
    %v266 = vpop.f32.mrb[0].mxu0
    %v267 = vadd.f32 0.0, %v266
    %v268 = vpop.f32.mrb[0].mxu0
    %v269 = vpop.f32.mrb[0].mxu0
    %v270 = vadd.f32 0.0, %v269
    %v271 = vpop.f32.mrb[0].mxu0
    %272 = vmatprep.mubr.bf16.mxu0 0
    %273 = vmatmul.mubr.bf16.gmra.mrb[0].mxu0 %v148
    %v274 = vpop.f32.mrb[0].mxu0
    %v275 = vadd.f32 0.0, %v274
    %v276 = vpop.f32.mrb[0].mxu0
    %v277 = vpop.f32.mrb[0].mxu0
    %v278 = vadd.f32 0.0, %v277
    %v279 = vpop.f32.mrb[0].mxu0
    %280 = vmatprep.mubr.bf16.mxu0 0
    %281 = vmatmul.mubr.bf16.gmra.mrb[0].mxu0 %v149
    %v282 = vpop.f32.mrb[0].mxu0
    %v283 = vadd.f32 0.0, %v282
    %v284 = vpop.f32.mrb[0].mxu0
    %v285 = vpop.f32.mrb[0].mxu0
    %v286 = vadd.f32 0.0, %v285
    %v287 = vpop.f32.mrb[0].mxu0
    %288 = vmatprep.mubr.bf16.mxu0 0
    %289 = vmatmul.mubr.bf16.gmra.mrb[0].mxu0 %v150
    %v290 = vpop.f32.mrb[0].mxu0
    %v291 = vadd.f32 0.0, %v290
    %v292 = vpop.f32.mrb[0].mxu0
    %v293 = vpop.f32.mrb[0].mxu0
    %v294 = vadd.f32 0.0, %v293
    %v295 = vpop.f32.mrb[0].mxu0
    %296 = vmatprep.mubr.bf16.mxu0 0
    %297 = vmatmul.mubr.bf16.gmra.mrb[0].mxu0 %v151
    %v298 = vpop.f32.mrb[0].mxu0
    %v299 = vadd.f32 0.0, %v298
    %v300 = vpop.f32.mrb[0].mxu0
    %v301 = vpop.f32.mrb[0].mxu0
    %v302 = vadd.f32 0.0, %v301
    %v303 = vpop.f32.mrb[0].mxu0
    %304 = vdwg.mxu0
    %v305 = vadd.f32 %v80, %v243
    %v306 = vadd.f32 %v81, %v246
    %v307 = vadd.f32 %v82, %v251
    %v308 = vadd.f32 %v83, %v254
    %v309 = vadd.f32 %v84, %v259
    %v310 = vadd.f32 %v85, %v262
    %v311 = vadd.f32 %v86, %v267
    %v312 = vadd.f32 %v87, %v270
    %v313 = vadd.f32 %v88, %v275
    %v314 = vadd.f32 %v89, %v278
    %v315 = vadd.f32 %v90, %v283
    %v316 = vadd.f32 %v91, %v286
    %v317 = vadd.f32 %v92, %v291
    %v318 = vadd.f32 %v93, %v294
    %v319 = vadd.f32 %v94, %v299
    %v320 = vadd.f32 %v95, %v302
    %321 = vst [vmem:[#allocation7] sm:$0xff] %v305
    %322 = vst [vmem:[#allocation7 + $0x8] sm:$0xff] %v306
    %323 = vst [vmem:[#allocation7 + $0x10] sm:$0xff] %v307
    %324 = vst [vmem:[#allocation7 + $0x18] sm:$0xff] %v308
    %325 = vst [vmem:[#allocation7 + $0x20] sm:$0xff] %v309
    %326 = vst [vmem:[#allocation7 + $0x28] sm:$0xff] %v310
    %327 = vst [vmem:[#allocation7 + $0x30] sm:$0xff] %v311
    %328 = vst [vmem:[#allocation7 + $0x38] sm:$0xff] %v312
    %329 = vst [vmem:[#allocation7 + $0x40] sm:$0xff] %v313
    %330 = vst [vmem:[#allocation7 + $0x48] sm:$0xff] %v314
    %331 = vst [vmem:[#allocation7 + $0x50] sm:$0xff] %v315
    %332 = vst [vmem:[#allocation7 + $0x58] sm:$0xff] %v316
    %333 = vst [vmem:[#allocation7 + $0x60] sm:$0xff] %v317
    %334 = vst [vmem:[#allocation7 + $0x68] sm:$0xff] %v318
    %335 = vst [vmem:[#allocation7 + $0x70] sm:$0xff] %v319
    %336 = vst [vmem:[#allocation7 + $0x78] sm:$0xff] %v320
    // Predicated region
    $region26: #{tpu_custom_call.1} parent=1 // pred_check
      %p337 = pneg %p44
    $region27: #{tpu_custom_call.1} parent=1 // pred_check_branch
      %339 = sbr.rel (%p337) target = $region29
    $region28: #{tpu_custom_call.1} parent=1 // pred_region
      %v340 = vld [vmem:[#allocation7] sm:$0xff]
      %v341 = vld [vmem:[#allocation7 + $0x8] sm:$0xff]
      %v342 = vld [vmem:[#allocation7 + $0x10] sm:$0xff]
      %v343 = vld [vmem:[#allocation7 + $0x18] sm:$0xff]
      %v344 = vld [vmem:[#allocation7 + $0x20] sm:$0xff]
      %v345 = vld [vmem:[#allocation7 + $0x28] sm:$0xff]
      %v346 = vld [vmem:[#allocation7 + $0x30] sm:$0xff]
      %v347 = vld [vmem:[#allocation7 + $0x38] sm:$0xff]
      %v348 = vld [vmem:[#allocation7 + $0x40] sm:$0xff]
      %v349 = vld [vmem:[#allocation7 + $0x48] sm:$0xff]
      %v350 = vld [vmem:[#allocation7 + $0x50] sm:$0xff]
      %v351 = vld [vmem:[#allocation7 + $0x58] sm:$0xff]
      %v352 = vld [vmem:[#allocation7 + $0x60] sm:$0xff]
      %v353 = vld [vmem:[#allocation7 + $0x68] sm:$0xff]
      %v354 = vld [vmem:[#allocation7 + $0x70] sm:$0xff]
      %v355 = vld [vmem:[#allocation7 + $0x78] sm:$0xff]
      %v356 = vld [vmem:[%s2] sm:$0x1]
      %v358 = vlaneseq
      %v359 = vshrl.u32 %v358, 7
      %v360 = vsub.s32 0, %v359
      %v361 = vrot.slane %v356, %v360
      %v363 = vadd.f32 %v340, %v361
      %v364 = vadd.f32 %v341, %v361
      %v365 = vadd.f32 %v342, %v361
      %v366 = vadd.f32 %v343, %v361
      %v367 = vadd.f32 %v344, %v361
      %v368 = vadd.f32 %v345, %v361
      %v369 = vadd.f32 %v346, %v361
      %v370 = vadd.f32 %v347, %v361
      %v371 = vadd.f32 %v348, %v361
      %v372 = vadd.f32 %v349, %v361
      %v373 = vadd.f32 %v350, %v361
      %v374 = vadd.f32 %v351, %v361
      %v375 = vadd.f32 %v352, %v361
      %v376 = vadd.f32 %v353, %v361
      %v377 = vadd.f32 %v354, %v361
      %v378 = vadd.f32 %v355, %v361
      %v379 = vmax.f32 %v363, 0.0
      %v380 = vmax.f32 %v364, 0.0
      %v381 = vmax.f32 %v365, 0.0
      %v382 = vmax.f32 %v366, 0.0
      %v383 = vmax.f32 %v367, 0.0
      %v384 = vmax.f32 %v368, 0.0
      %v385 = vmax.f32 %v369, 0.0
      %v386 = vmax.f32 %v370, 0.0
      %v387 = vmax.f32 %v371, 0.0
      %v388 = vmax.f32 %v372, 0.0
      %v389 = vmax.f32 %v373, 0.0
      %v390 = vmax.f32 %v374, 0.0
      %v391 = vmax.f32 %v375, 0.0
      %v392 = vmax.f32 %v376, 0.0
      %v393 = vmax.f32 %v377, 0.0
      %v394 = vmax.f32 %v378, 0.0
      %395 = vst [vmem:[#allocation7] sm:$0xff] %v379
      %396 = vst [vmem:[#allocation7 + $0x8] sm:$0xff] %v380
      %397 = vst [vmem:[#allocation7 + $0x10] sm:$0xff] %v381
      %398 = vst [vmem:[#allocation7 + $0x18] sm:$0xff] %v382
      %399 = vst [vmem:[#allocation7 + $0x20] sm:$0xff] %v383
      %400 = vst [vmem:[#allocation7 + $0x28] sm:$0xff] %v384
      %401 = vst [vmem:[#allocation7 + $0x30] sm:$0xff] %v385
      %402 = vst [vmem:[#allocation7 + $0x38] sm:$0xff] %v386
      %403 = vst [vmem:[#allocation7 + $0x40] sm:$0xff] %v387
      %404 = vst [vmem:[#allocation7 + $0x48] sm:$0xff] %v388
      %405 = vst [vmem:[#allocation7 + $0x50] sm:$0xff] %v389
      %406 = vst [vmem:[#allocation7 + $0x58] sm:$0xff] %v390
      %407 = vst [vmem:[#allocation7 + $0x60] sm:$0xff] %v391
      %408 = vst [vmem:[#allocation7 + $0x68] sm:$0xff] %v392
      %409 = vst [vmem:[#allocation7 + $0x70] sm:$0xff] %v393
      %410 = vst [vmem:[#allocation7 + $0x78] sm:$0xff] %v394
    $region29: #{tpu_custom_call.1} parent=1 // pred_fallthru
      _
    // Predicated region
    $region30: #{tpu_custom_call.1} parent=1 // pred_check
      _
    $region31: #{tpu_custom_call.1} parent=1 // pred_check_branch
      %412 = sbr.rel (0) target = $region33
    $region32: #{tpu_custom_call.1} parent=1 // pred_region
      %s414 = ssub.s32 2048, 2048
      %415 = vsyncadd [#allocation4], %s414
      %s416 = sshll.u32 [#allocation7], 4
      %s417 = int_to_ptr.vmem [resolvable:$true] %s416
      %422 = dma.vmem_to_hbm [thread:$0]  %s417, 2048, %s3, [#allocation4], 128, 128, 8
    $region33: #{tpu_custom_call.1} parent=1 // pred_fallthru
      _
    // Predicated region
    $region34: #{tpu_custom_call.1} parent=1 // pred_check
      _
    $region35: #{tpu_custom_call.1} parent=1 // pred_check_branch
      %424 = sbr.rel (0) target = $region37
    $region36: #{tpu_custom_call.1} parent=1 // pred_region
      %425 = dma.done [#allocation4], 2048
    $region37: #{tpu_custom_call.1} parent=1 // pred_fallthru
      _
    %426 = vsyncpa [#allocation3], 1
    %427 = vsyncpa [#allocation6], 1
    %428 = vsyncpa [#allocation4], 1

</llo_original>
